<compile_context>
chip_gen: v5e
topology: v5e:2x2
jax: 0.10.0
libtpu: 0.0.40
codegen_flags: <defaults>
</compile_context>

<pallas_src>
import functools

import jax
import jax.numpy as jnp
import numpy as np
from jax.experimental import pallas as pl
from jax.experimental.pallas import tpu as pltpu


def _round_up(x, n):
    return ((x + n - 1) // n) * n


def _cdiv(a, b):
    return (a + b - 1) // b


def _encoder_kernel_resident(x_ref, wt_ref, b_ref, o_ref, *, no_imgnorm, eps,
                             mxu_dtype):
    # x_ref: (TM, K)   wt_ref: (K, E_pad)   b_ref: (1, E_pad)   o_ref: (TM, E_pad)
    x = x_ref[...]
    if mxu_dtype is not None and x.dtype != mxu_dtype:
        x = x.astype(mxu_dtype)
    feats = jnp.dot(x, wt_ref[...], preferred_element_type=jnp.float32)
    feats = feats + b_ref[...].astype(jnp.float32)
    if not no_imgnorm:
        norm = jnp.sqrt(jnp.sum(feats * feats, axis=-1, keepdims=True)) + eps
        feats = feats * pl.reciprocal(norm, approx=True)
    o_ref[...] = feats.astype(o_ref.dtype)


def _encoder_kernel_ktiled(x_ref, wt_ref, b_ref, o_ref, acc_ref, *, no_imgnorm,
                           eps, mxu_dtype):
    # x_ref: (TM, TK)  wt_ref: (TK, E_pad)  b_ref: (1, E_pad)
    # o_ref: (TM, E_pad)  acc_ref: f32 (TM, E_pad) scratch, persists across K axis.
    k = pl.program_id(1)

    @pl.when(k == 0)
    def _():
        acc_ref[...] = jnp.zeros_like(acc_ref)

    x = x_ref[...]
    if mxu_dtype is not None and x.dtype != mxu_dtype:
        x = x.astype(mxu_dtype)
    acc_ref[...] += jnp.dot(x, wt_ref[...], preferred_element_type=jnp.float32)

    @pl.when(k == pl.num_programs(1) - 1)
    def _():
        feats = acc_ref[...] + b_ref[...].astype(jnp.float32)
        if not no_imgnorm:
            norm = jnp.sqrt(jnp.sum(feats * feats, axis=-1, keepdims=True)) + eps
            feats = feats * pl.reciprocal(norm, approx=True)
        o_ref[...] = feats.astype(o_ref.dtype)


@functools.partial(
    jax.jit,
    static_argnames=("no_imgnorm", "eps", "tile_m", "tile_k", "mxu_dtype",
                     "_force_ktiled"))
def encoder_image_precomp(images, weight, bias, *, no_imgnorm=False, eps=1e-8,
                          tile_m=512, tile_k=512, mxu_dtype=None,
                          _force_ktiled=False):
    """images: (..., img_dim); weight: (embed_size, img_dim); bias: (embed_size,)."""
    img_dim = images.shape[-1]
    embed_size = weight.shape[0]
    lead_shape = images.shape[:-1]
    m = int(np.prod(lead_shape)) if lead_shape else 1

    x2d = images.reshape(m, img_dim)

    x_it = jnp.dtype(images.dtype).itemsize
    w_store_dtype = jnp.dtype(mxu_dtype) if mxu_dtype is not None else jnp.dtype(weight.dtype)
    w_it = w_store_dtype.itemsize
    o_it = x_it

    # Lane-dense output: pad embed (lane) dim to a multiple of 128.
    e_pad = _round_up(embed_size, 128)

    # Dtype-aware minimum sublane count (8 for 4B, 16 for 2B, 32 for 1B dtypes).
    min_sub = {4: 8, 2: 16, 1: 32}.get(x_it, 8)
    tm = max(min_sub, min(int(tile_m), _round_up(m, min_sub)))
    tm = _round_up(tm, min_sub)
    # Keep >= 2 "parallel" M tiles so both v7x TensorCores get work (neutral on 1-TC chips).
    if m >= 2 * min_sub and _cdiv(m, tm) < 2:
        tm = _round_up(_cdiv(m, 2), min_sub)

    # VMEM budget (leave headroom; v7x only has 64 MiB physical).
    try:
        vmem_cap = int(pltpu.get_tpu_info().vmem_capacity_bytes)
    except Exception:
        vmem_cap = 64 << 20
    budget = max(min(int(vmem_cap * 0.85), 100 << 20), 24 << 20)

    def resident_fp(t):
        return (img_dim * e_pad * w_it * 2     # resident W^T (worst case: double-buffered)
                + 2 * e_pad * 4 * 2            # bias
                + t * img_dim * x_it * 2       # X tile, double-buffered
                + t * e_pad * o_it * 2         # out tile, double-buffered
                + t * e_pad * 4 * 2)           # f32 feats temporaries

    def ktiled_fp(t, tk):
        return (tk * e_pad * w_it * 2          # W^T K-tile, double-buffered
                + t * tk * x_it * 2            # X tile, double-buffered
                + t * e_pad * o_it * 2         # out tile
                + t * e_pad * 4                # f32 accumulator scratch
                + 2 * e_pad * 4 * 2            # bias
                + t * e_pad * 4)               # f32 temporaries

    # --- choose path: resident weight (preferred) vs K-tiled fallback ---
    tm_res = tm
    while resident_fp(tm_res) > budget and tm_res > max(min_sub, 128):
        tm_res = max(max(min_sub, 128), _round_up(tm_res // 2, min_sub))
    use_resident = resident_fp(tm_res) <= budget
    if _force_ktiled:
        use_resident = False

    # --- prepare operands (one-time transpose / pads; no per-call M pad) ---
    w_t = weight.T                                   # (K, E) -- one-time transpose
    if mxu_dtype is not None:
        w_t = w_t.astype(mxu_dtype)
    b2d = bias.reshape(1, embed_size)
    if e_pad != embed_size:
        w_t = jnp.pad(w_t, ((0, 0), (0, e_pad - embed_size)))
        b2d = jnp.pad(b2d, ((0, 0), (0, e_pad - embed_size)))

    if use_resident:
        tm_final = tm_res
        k_pad = img_dim
        tk = img_dim
    else:
        tk = min(max(128, _round_up(int(tile_k), 128)), _round_up(img_dim, 128))
        tm_final = tm
        while ktiled_fp(tm_final, tk) > budget and tk > 128:
            tk = _round_up(tk // 2, 128)
        while ktiled_fp(tm_final, tk) > budget and tm_final > max(min_sub, 128):
            tm_final = max(max(min_sub, 128), _round_up(tm_final // 2, min_sub))
        # K must be a multiple of tk (zero-pad: mathematically inert for x @ W^T,
        # and required so partial K tiles cannot pollute the accumulator).
        k_pad = _round_up(img_dim, tk)
        if k_pad != img_dim:
            x2d = jnp.pad(x2d, ((0, 0), (0, k_pad - img_dim)))
            w_t = jnp.pad(w_t, ((0, k_pad - img_dim), (0, 0)))

    needed = resident_fp(tm_final) if use_resident else ktiled_fp(tm_final, tk)
    vmem_limit = int(min(budget, max(needed * 5 // 4 + (4 << 20), 32 << 20)))

    flops = 2 * m * k_pad * e_pad
    transcendentals = 0 if no_imgnorm else 2 * m
    bytes_accessed = (m * k_pad * x_it + k_pad * e_pad * w_it
                      + e_pad * 4 + m * e_pad * o_it)
    cost = pl.CostEstimate(flops=flops, transcendentals=transcendentals,
                           bytes_accessed=bytes_accessed)

    if use_resident:
        kernel = functools.partial(_encoder_kernel_resident,
                                   no_imgnorm=no_imgnorm, eps=eps,
                                   mxu_dtype=mxu_dtype)
        out = pl.pallas_call(
            kernel,
            out_shape=jax.ShapeDtypeStruct((m, e_pad), images.dtype),
            grid_spec=pltpu.PrefetchScalarGridSpec(
                num_scalar_prefetch=0,
                grid=(_cdiv(m, tm_final),),
                in_specs=[
                    # Row tile of X: pipelined / double-buffered along the grid.
                    pl.BlockSpec((tm_final, k_pad), lambda i: (i, 0)),
                    # Full W^T, constant index_map -> stays resident in VMEM.
                    pl.BlockSpec((k_pad, e_pad), lambda i: (0, 0)),
                    # Full bias, resident.
                    pl.BlockSpec((1, e_pad), lambda i: (0, 0)),
                ],
                out_specs=pl.BlockSpec((tm_final, e_pad), lambda i: (i, 0)),
            ),
            compiler_params=pltpu.CompilerParams(
                dimension_semantics=("parallel",),
                vmem_limit_bytes=vmem_limit,
            ),
            cost_estimate=cost,
        )(x2d, w_t, b2d)
    else:
        kernel = functools.partial(_encoder_kernel_ktiled,
                                   no_imgnorm=no_imgnorm, eps=eps,
                                   mxu_dtype=mxu_dtype)
        out = pl.pallas_call(
            kernel,
            out_shape=jax.ShapeDtypeStruct((m, e_pad), images.dtype),
            grid_spec=pltpu.PrefetchScalarGridSpec(
                num_scalar_prefetch=0,
                grid=(_cdiv(m, tm_final), k_pad // tk),
                in_specs=[
                    pl.BlockSpec((tm_final, tk), lambda i, k: (i, k)),
                    pl.BlockSpec((tk, e_pad), lambda i, k: (k, 0)),
                    pl.BlockSpec((1, e_pad), lambda i, k: (0, 0)),
                ],
                out_specs=pl.BlockSpec((tm_final, e_pad), lambda i, k: (i, 0)),
                scratch_shapes=[pltpu.VMEM((tm_final, e_pad), jnp.float32)],
            ),
            compiler_params=pltpu.CompilerParams(
                dimension_semantics=("parallel", "arbitrary"),
                vmem_limit_bytes=vmem_limit,
            ),
            cost_estimate=cost,
        )(x2d, w_t, b2d)

    if e_pad != embed_size:
        out = out[:, :embed_size]
    return out.reshape(*lead_shape, embed_size)


def init_params(img_dim, embed_size, key):
    """Xavier-uniform weight (as in init_weights), zero bias — deterministic."""
    r = np.sqrt(6.0) / np.sqrt(img_dim + embed_size)
    weight = jax.random.uniform(
        key, (embed_size, img_dim), dtype=jnp.float32, minval=-r, maxval=r
    )
    bias = jnp.zeros((embed_size,), dtype=jnp.float32)
    return weight, bias


def reference_forward(images, weight, bias, no_imgnorm=False, eps=1e-8):
    feats = images @ weight.T + bias
    if not no_imgnorm:
        norm = jnp.sqrt(jnp.sum(feats ** 2, axis=-1, keepdims=True)) + eps
        feats = feats / norm
    return feats


if __name__ == "__main__":
    key = jax.random.PRNGKey(0)
    k_img, k_w, k_img2, k_w2 = jax.random.split(key, 4)

    batch, n_regions, img_dim, embed_size = 2, 8, 32, 32
    images = jax.random.normal(k_img, (batch, n_regions, img_dim), dtype=jnp.float32)
    weight, bias = init_params(img_dim, embed_size, k_w)

    # With l2norm (default path); approx reciprocal -> slightly looser tolerance.
    out = encoder_image_precomp(images, weight, bias, no_imgnorm=False)
    out = jax.block_until_ready(out)
    ref = reference_forward(images, weight, bias, no_imgnorm=False)
    np.testing.assert_allclose(np.asarray(out), np.asarray(ref), rtol=2e-3, atol=2e-3)

    # no_imgnorm path: pure fc, tight tolerance.
    out2 = encoder_image_precomp(images, weight, bias, no_imgnorm=True)
    out2 = jax.block_until_ready(out2)
    ref2 = reference_forward(images, weight, bias, no_imgnorm=True)
    np.testing.assert_allclose(np.asarray(out2), np.asarray(ref2), rtol=1e-5, atol=1e-5)

    # Optional bf16-MXU path (f32 accumulation, f32 l2norm epilogue).
    out3 = encoder_image_precomp(images, weight, bias, no_imgnorm=False,
                                 mxu_dtype=jnp.bfloat16)
    out3 = jax.block_until_ready(out3)
    np.testing.assert_allclose(np.asarray(out3), np.asarray(ref), rtol=2e-2, atol=2e-2)

    # Exercise the K-tiled fallback (used when the resident weight exceeds VMEM)
    # on a small shape with 2 K steps.
    img_dim2 = 256
    images2 = jax.random.normal(k_img2, (batch, n_regions, img_dim2), dtype=jnp.float32)
    weight2, bias2 = init_params(img_dim2, embed_size, k_w2)
    out4 = encoder_image_precomp(images2, weight2, bias2, no_imgnorm=False,
                                 tile_k=128, _force_ktiled=True)
    out4 = jax.block_until_ready(out4)
    ref4 = reference_forward(images2, weight2, bias2, no_imgnorm=False)
    np.testing.assert_allclose(np.asarray(out4), np.asarray(ref4), rtol=2e-3, atol=2e-3)

    print("KERNEL_OK")
</pallas_src>

<mosaic_0001>
module attributes {stable_mosaic.version = 11 : i64} {
  func.func @_encoder_kernel_resident(%arg0: i32, %arg1: memref<8x32xf32, #tpu.memory_space<vmem>>, %arg2: memref<32x128xf32, #tpu.memory_space<vmem>>, %arg3: memref<1x128xf32, #tpu.memory_space<vmem>>, %arg4: memref<8x128xf32, #tpu.memory_space<vmem>>) attributes {dimension_semantics = [#tpu.dimension_semantics<parallel>], iteration_bounds = array<i64: 2>, scalar_prefetch = 0 : i64, scratch_operands = 0 : i64, tpu.core_type = #tpu.core_type<tc>, window_params = [{transform_indices = @transform_0, window_bounds = array<i64: 8, 32>}, {pipeline_mode = #tpu.pipeline_mode<synchronous>, transform_indices = @transform_1, window_bounds = array<i64: 32, 128>}, {pipeline_mode = #tpu.pipeline_mode<synchronous>, transform_indices = @transform_2, window_bounds = array<i64: 1, 128>}, {transform_indices = @transform_3, window_bounds = array<i64: 8, 128>}]} {
    %c0 = arith.constant 0 : index
    %c0_0 = arith.constant 0 : index
    %0 = vector.load %arg1[%c0, %c0_0] : memref<8x32xf32, #tpu.memory_space<vmem>>, vector<8x32xf32>
    %c0_1 = arith.constant 0 : index
    %c0_2 = arith.constant 0 : index
    %1 = vector.load %arg2[%c0_1, %c0_2] : memref<32x128xf32, #tpu.memory_space<vmem>>, vector<32x128xf32>
    %cst = arith.constant dense<0.000000e+00> : vector<8x128xf32>
    %2 = tpu.matmul %0, %1, %cst {dimension_numbers = #tpu.dot_dimension_numbers<[1], [0], [0], [1], [0, 0, 1, 1], [], []>} : vector<8x32xf32>, vector<32x128xf32>, vector<8x128xf32> -> vector<8x128xf32>
    %c0_3 = arith.constant 0 : index
    %c0_4 = arith.constant 0 : index
    %3 = vector.load %arg3[%c0_3, %c0_4] : memref<1x128xf32, #tpu.memory_space<vmem>>, vector<1x128xf32>
    %4 = vector.broadcast %3 : vector<1x128xf32> to vector<8x128xf32>
    %5 = arith.addf %2, %4 : vector<8x128xf32>
    %6 = arith.mulf %5, %5 : vector<8x128xf32>
    %cst_5 = arith.constant dense<0.000000e+00> : vector<8xf32>
    %7 = vector.multi_reduction <add>, %6, %cst_5 [1] : vector<8x128xf32> to vector<8xf32>
    %8 = vector.shape_cast %7 : vector<8xf32> to vector<8x1xf32>
    %9 = math.sqrt %8 : vector<8x1xf32>
    %cst_6 = arith.constant 9.99999993E-9 : f32
    %10 = vector.broadcast %cst_6 : f32 to vector<8x1xf32>
    %11 = arith.addf %9, %10 : vector<8x1xf32>
    %12 = tpu.reciprocal %11 {approx = true} : vector<8x1xf32> -> vector<8x1xf32>
    %13 = vector.broadcast %12 : vector<8x1xf32> to vector<8x128xf32>
    %14 = arith.mulf %5, %13 : vector<8x128xf32>
    %c0_7 = arith.constant 0 : index
    %c0_8 = arith.constant 0 : index
    %15 = vector.load %arg4[%c0_7, %c0_8] : memref<8x128xf32, #tpu.memory_space<vmem>>, vector<8x128xf32>
    tpu.vector_store %arg4[%c0_7, %c0_8], %14 {strides = array<i32>} : memref<8x128xf32, #tpu.memory_space<vmem>>, vector<8x128xf32>,
    return
  }
  func.func @transform_0(%arg0: i32) -> (i32, i32) {
    %c0_i32 = arith.constant 0 : i32
    %c0_i32_0 = arith.constant 0 : i32
    return %arg0, %c0_i32 : i32, i32
  }
  func.func @transform_1(%arg0: i32) -> (i32, i32) {
    %c0_i32 = arith.constant 0 : i32
    %c0_i32_0 = arith.constant 0 : i32
    %c0_i32_1 = arith.constant 0 : i32
    return %c0_i32, %c0_i32_0 : i32, i32
  }
  func.func @transform_2(%arg0: i32) -> (i32, i32) {
    %c0_i32 = arith.constant 0 : i32
    %c0_i32_0 = arith.constant 0 : i32
    %c0_i32_1 = arith.constant 0 : i32
    return %c0_i32, %c0_i32_0 : i32, i32
  }
  func.func @transform_3(%arg0: i32) -> (i32, i32) {
    %c0_i32 = arith.constant 0 : i32
    %c0_i32_0 = arith.constant 0 : i32
    return %arg0, %c0_i32 : i32, i32
  }
}

</mosaic_0001>

<llo_original>
// kernel: encoder_image_precomp.1
$region0: #{encoder_image_precomp.1}
  #allocation0 [shape = 'u32[]', space=smem, size = 0x4, offset = 0x4, fixed_abs, tag = 'smem constant byte address 0x4 - core index']
  #allocation1 [shape = 'u32[72,128]{1,0:T(1,128)}', space=vmem, size = 0x9000, scoped, tag = 'internal scratch']
  %s0 = inlined_call_operand.vmem [shape: f32[16,32], index: 0, kind: input, shape index: {}]
  %s1 = inlined_call_operand.vmem [shape: f32[32,128], index: 1, kind: input, shape index: {}]
  %s2 = inlined_call_operand.vmem [shape: f32[1,128], index: 2, kind: input, shape index: {}]
  %s3 = inlined_call_operand.vmem [shape: f32[16,128], index: 3, kind: output, shape index: {}]
  %s4 = sld [smem:[#allocation0]]
  $region45: #{encoder_image_precomp.1} parent=0
    _
  %s6 = ssub.s32 1, %s4
  %s7 = scalar_select 0, %s6, %s4
  loop: start=0, step=1, limit=4
  $region2: #{encoder_image_precomp.1} parent=0 // loop_pre_header
    _
  $region3: #{encoder_image_precomp.1} parent=0 // loop_header
    %s9 = sphi 0, %s13
    %p10 = scmp.ge.s32.totalorder %s9, 4
    %s19 = sphi 0, %s21
    %s22 = sphi 0, %s19
    %s23 = sphi 0, %s22
    %s39 = sphi 0, %s23
    %s43 = sphi 0, %s43
    %s45 = sphi 0, %s43
    %s46 = sphi 0, %s45
    %s60 = sphi 0, %s46
    %s64 = sphi 0, %s64
    %s66 = sphi 0, %s64
    %s67 = sphi 0, %s66
    %s81 = sphi 0, %s67
    %s87 = sphi 0, %s89
    %s90 = sphi 0, %s87
    %s91 = sphi 0, %s90
    %s107 = sphi 0, %s91
  $region4: #{encoder_image_precomp.1} parent=0 // loop_header_branch
    %12 = sbr.rel (%p10) target = $region8
  $region5: #{encoder_image_precomp.1} parent=0 // loop_body
    %s14 = ssub.s32 %s9, 1
    %s15 = ssub.s32 %s9, 2
    %s16 = sadd.s32 %s9, 1
    %s17 = ssub.s32 %s9, %s16
    %p18 = scmp.eq.s32.totalorder %s17, 0
    %s20 = sadd.s32 %s19, 1
    %s21 = scalar_select %p18, %s19, %s20
    %p24 = pneg %p18
    %p25 = scmp.eq.s32.totalorder %s9, 1
    %p26 = por %p24, %p25
    %p27 = scmp.ne.s32.totalorder %s19, %s22
    %p28 = scmp.eq.s32.totalorder %s9, 0
    %p29 = por %p27, %p28
    %p30 = scmp.ne.s32.totalorder %s19, %s22
    %p31 = scmp.eq.s32.totalorder %s14, 1
    %p32 = por %p30, %p31
    %p33 = scmp.ne.s32.totalorder %s22, %s23
    %p34 = scmp.eq.s32.totalorder %s14, 0
    %p35 = por %p33, %p34
    %p36 = scmp.ne.s32.totalorder %s22, %s23
    %p37 = scmp.eq.s32.totalorder %s15, 1
    %p38 = por %p36, %p37
    %p40 = scmp.ne.s32.totalorder %s23, %s39
    %p41 = scmp.eq.s32.totalorder %s15, 0
    %p42 = por %p40, %p41
    %s44 = sadd.s32 %s43, 1
    %p47 = scmp.eq.s32.totalorder %s9, 1
    %p48 = scmp.ne.s32.totalorder %s43, %s45
    %p49 = scmp.eq.s32.totalorder %s9, 0
    %p50 = por %p48, %p49
    %p51 = scmp.ne.s32.totalorder %s43, %s45
    %p52 = scmp.eq.s32.totalorder %s14, 1
    %p53 = por %p51, %p52
    %p54 = scmp.ne.s32.totalorder %s45, %s46
    %p55 = scmp.eq.s32.totalorder %s14, 0
    %p56 = por %p54, %p55
    %p57 = scmp.ne.s32.totalorder %s45, %s46
    %p58 = scmp.eq.s32.totalorder %s15, 1
    %p59 = por %p57, %p58
    %p61 = scmp.ne.s32.totalorder %s46, %s60
    %p62 = scmp.eq.s32.totalorder %s15, 0
    %p63 = por %p61, %p62
    %s65 = sadd.s32 %s64, 1
    %p68 = scmp.eq.s32.totalorder %s9, 1
    %p69 = scmp.ne.s32.totalorder %s64, %s66
    %p70 = scmp.eq.s32.totalorder %s9, 0
    %p71 = por %p69, %p70
    %p72 = scmp.ne.s32.totalorder %s64, %s66
    %p73 = scmp.eq.s32.totalorder %s14, 1
    %p74 = por %p72, %p73
    %p75 = scmp.ne.s32.totalorder %s66, %s67
    %p76 = scmp.eq.s32.totalorder %s14, 0
    %p77 = por %p75, %p76
    %p78 = scmp.ne.s32.totalorder %s66, %s67
    %p79 = scmp.eq.s32.totalorder %s15, 1
    %p80 = por %p78, %p79
    %p82 = scmp.ne.s32.totalorder %s67, %s81
    %p83 = scmp.eq.s32.totalorder %s15, 0
    %p84 = por %p82, %p83
    %s85 = ssub.s32 %s9, %s16
    %p86 = scmp.eq.s32.totalorder %s85, 0
    %s88 = sadd.s32 %s87, 1
    %s89 = scalar_select %p86, %s87, %s88
    %p92 = pneg %p86
    %p93 = scmp.eq.s32.totalorder %s9, 1
    %p94 = por %p92, %p93
    %p95 = scmp.ne.s32.totalorder %s87, %s90
    %p96 = scmp.eq.s32.totalorder %s9, 0
    %p97 = por %p95, %p96
    %p98 = scmp.ne.s32.totalorder %s87, %s90
    %p99 = scmp.eq.s32.totalorder %s14, 1
    %p100 = por %p98, %p99
    %p101 = scmp.ne.s32.totalorder %s90, %s91
    %p102 = scmp.eq.s32.totalorder %s14, 0
    %p103 = por %p101, %p102
    %p104 = scmp.ne.s32.totalorder %s90, %s91
    %p105 = scmp.eq.s32.totalorder %s15, 1
    %p106 = por %p104, %p105
    %p108 = scmp.ne.s32.totalorder %s91, %s107
    %p109 = scmp.eq.s32.totalorder %s15, 0
    %p110 = por %p108, %p109
    %p111 = scmp.le.s32.totalorder 1, %s9
    %p112 = scmp.lt.s32.totalorder %s9, 3
    %p113 = pnand %p111, %p112
    %p114 = pneg %p113
    // Predicated region
    $region9: #{encoder_image_precomp.1} parent=5 // pred_check
      _
    $region10: #{encoder_image_precomp.1} parent=5 // pred_check_branch
      %116 = sbr.rel (%p113) target = $region12
    $region11: #{encoder_image_precomp.1} parent=5 // pred_region
      %s117 = ssub.s32 %s9, 1
      // Predicated region
      $region13: #{encoder_image_precomp.1} parent=11 // pred_check
        %p118 = pneg %p56
      $region14: #{encoder_image_precomp.1} parent=11 // pred_check_branch
        %120 = sbr.rel (%p118) target = $region16
      $region15: #{encoder_image_precomp.1} parent=11 // pred_region
        _
      $region16: #{encoder_image_precomp.1} parent=11 // pred_fallthru
        _
      // Predicated region
      $region17: #{encoder_image_precomp.1} parent=11 // pred_check
        %p121 = pneg %p77
      $region18: #{encoder_image_precomp.1} parent=11 // pred_check_branch
        %123 = sbr.rel (%p121) target = $region20
      $region19: #{encoder_image_precomp.1} parent=11 // pred_region
        _
      $region20: #{encoder_image_precomp.1} parent=11 // pred_fallthru
        _
    $region12: #{encoder_image_precomp.1} parent=5 // pred_fallthru
      _
    %p124 = scmp.lt.s32.totalorder %s9, 2
    // Predicated region
    $region21: #{encoder_image_precomp.1} parent=5 // pred_check
      %p125 = pneg %p124
    $region22: #{encoder_image_precomp.1} parent=5 // pred_check_branch
      %127 = sbr.rel (%p125) target = $region24
    $region23: #{encoder_image_precomp.1} parent=5 // pred_region
      // Predicated region
      $region25: #{encoder_image_precomp.1} parent=23 // pred_check
        %p128 = pneg %p29
      $region26: #{encoder_image_precomp.1} parent=23 // pred_check_branch
        %130 = sbr.rel (%p128) target = $region28
      $region27: #{encoder_image_precomp.1} parent=23 // pred_region
        %p131 = scmp.lt.s32.totalorder %s9, 1
        %s132 = scalar_select %p131, %s9, 1
        %s133 = smul.addr %s132, 8
        %s134 = scalar_lea.vmem %s0, %s133
      $region28: #{encoder_image_precomp.1} parent=23 // pred_fallthru
        _
    $region24: #{encoder_image_precomp.1} parent=5 // pred_fallthru
      _
    %p135 = scmp.le.s32.totalorder 1, %s9
    %p136 = scmp.lt.s32.totalorder %s9, 3
    %p137 = pnand %p135, %p136
    %p138 = pneg %p137
    // Predicated region
    $region29: #{encoder_image_precomp.1} parent=5 // pred_check
      _
    $region30: #{encoder_image_precomp.1} parent=5 // pred_check_branch
      %140 = sbr.rel (%p137) target = $region32
    $region31: #{encoder_image_precomp.1} parent=5 // pred_region
      %s141 = ssub.s32 %s9, 1
      %p142 = scmp.lt.s32.totalorder %s14, 1
      %s143 = scalar_select %p142, %s14, 1
      %s144 = smul.addr %s143, 8
      %s145 = scalar_lea.vmem %s0, %s144
      %p146 = pneg %p35
      %p147 = pneg %p32
      %p148 = pneg %p56
      %p149 = pneg %p53
      %p150 = pneg %p77
      %p151 = pneg %p74
      %p152 = pneg %p103
      %p153 = pneg %p100
      %p154 = scmp.lt.s32.totalorder %s14, 1
      %s155 = scalar_select %p154, %s14, 1
      %s156 = smul.addr %s155, 8
      %s157 = scalar_lea.vmem %s3, %s156
      %p158 = scmp.lt.s32.totalorder %s14, 1
      %s159 = scalar_select %p158, %s14, 1
      %s160 = smul.addr %s159, 8
      %s161 = scalar_lea.vmem %s0, %s160
      %p162 = scmp.lt.s32.totalorder %s14, 1
      %s163 = scalar_select %p162, %s14, 1
      %s164 = smul.addr %s163, 8
      %s165 = scalar_lea.vmem %s3, %s164
      %v166 = vld [vmem:[%s161] sm:$0xff]
      %v167 = vld [vmem:[%s1] sm:$0xff]
      %v168 = vld [vmem:[%s1 + $0x8] sm:$0xff]
      %v169 = vld [vmem:[%s1 + $0x10] sm:$0xff]
      %v170 = vld [vmem:[%s1 + $0x18] sm:$0xff]
      %v171 = vld [vmem:[%s2] sm:$0x1]
      %v173 = vperm.slane %v171, 0
      %vm175 = vcmask 261120
      %v177 = vsel %vm175, %v166, 0
      %179 = vmatpush.msra.mxu0 0.0
      %180 = vmatpush.msra.mxu0 0.0
      %181 = vmatpush.msra.mxu0 0.0
      %182 = vmatpush.msra.mxu0 0.0
      %183 = vmatpush.msra.mxu0 0.0
      %184 = vmatpush.msra.mxu0 0.0
      %185 = vmatpush.msra.mxu0 0.0
      %186 = vmatpush.msra.mxu0 0.0
      %187 = vmatpush.msra.mxu0 0.0
      %188 = vmatpush.msra.mxu0 0.0
      %189 = vmatpush.msra.mxu0 0.0
      %190 = vmatpush.msra.mxu0 0.0
      %191 = vmatpush.msra.mxu0 %v170
      %192 = vmatpush.msra.mxu0 %v169
      %193 = vmatpush.msra.mxu0 %v168
      %194 = vmatpush.msra.mxu0 %v167
      %195 = vmatmul.f32.gmra.mxu0 %v177
      %v196 = vpop.f32.mrf.mxu0
      %v197 = vadd.f32 %v173, %v196
      %198 = vdwg.mxu0
      %v199 = vmul.f32 %v197, %v197
      %200 = vadd.xlane.f32.xlu0 %v199
      %v201 = vpop.xlane.xlu0 %200
      %v202 = vrsqrt.pop %v201
      %v203 = vmul.f32 %v202, %v201
      %v204 = vmul.f32 %v203, %v202
      %v205 = vmul.f32 0.5, %v204
      %v206 = vsub.f32 1.5, %v205
      %v207 = vmul.f32 %v202, %v206
      %v208 = vmul.f32 %v201, %v207
      %vm209 = vcmp.eq.f32.partialorder %v201, inf
      %v210 = vsel %vm209, %v201, %v208
      %vm211 = vcmp.eq.f32.partialorder %v201, 0.0
      %v212 = vand.u32 %v201, 2147483648
      %v213 = vsel %vm211, %v212, %v210
      %v214 = vadd.f32 %v213, 1e-08
      %v215 = vrcp.pop %v214
      %v216 = vmul.f32 %v197, %v215
      %217 = vst [vmem:[%s165] sm:$0xff] %v216
      %p218 = scmp.lt.s32.totalorder %s14, 1
      %s219 = scalar_select %p218, %s14, 1
      %s220 = smul.addr %s219, 8
      %s221 = scalar_lea.vmem %s3, %s220
      // Predicated region
      $region33: #{encoder_image_precomp.1} parent=31 // pred_check
        %p222 = pneg %p100
      $region34: #{encoder_image_precomp.1} parent=31 // pred_check_branch
        %224 = sbr.rel (%p222) target = $region36
      $region35: #{encoder_image_precomp.1} parent=31 // pred_region
        _
      $region36: #{encoder_image_precomp.1} parent=31 // pred_fallthru
        _
    $region32: #{encoder_image_precomp.1} parent=5 // pred_fallthru
      _
    %p225 = scmp.le.s32.totalorder 2, %s9
    // Predicated region
    $region37: #{encoder_image_precomp.1} parent=5 // pred_check
      %p226 = pneg %p225
    $region38: #{encoder_image_precomp.1} parent=5 // pred_check_branch
      %228 = sbr.rel (%p226) target = $region40
    $region39: #{encoder_image_precomp.1} parent=5 // pred_region
      %s229 = ssub.s32 %s9, 2
      // Predicated region
      $region41: #{encoder_image_precomp.1} parent=39 // pred_check
        %p230 = pneg %p106
      $region42: #{encoder_image_precomp.1} parent=39 // pred_check_branch
        %232 = sbr.rel (%p230) target = $region44
      $region43: #{encoder_image_precomp.1} parent=39 // pred_region
        %p233 = scmp.lt.s32.totalorder %s15, 1
        %s234 = scalar_select %p233, %s15, 1
        %s235 = smul.addr %s234, 8
        %s236 = scalar_lea.vmem %s3, %s235
      $region44: #{encoder_image_precomp.1} parent=39 // pred_fallthru
        _
    $region40: #{encoder_image_precomp.1} parent=5 // pred_fallthru
      _
  $region6: #{encoder_image_precomp.1} parent=0 // loop_footer
    %s13 = sadd.s32 1, %s9
  $region7: #{encoder_image_precomp.1} parent=0 // loop_footer_branch
    %8 = sbr.rel target = $region3
  $region8: #{encoder_image_precomp.1} parent=0 // loop_exit
    _

</llo_original>
